<compile_context>
chip_gen: v7x
topology: tpu7x:2x2x1
jax: 0.10.0
libtpu: 0.0.40
codegen_flags: <defaults>
</compile_context>

<pallas_src>
import functools

import jax
import jax.numpy as jnp
from jax.experimental import pallas as pl
from jax.experimental.pallas import tpu as pltpu


def _round_up(x, m):
    return (x + m - 1) // m * m


def _geometry_prior_kernel(w1_ref, w2_ref, out_ref, *, k):
    # w1_ref : (MID_PAD, 8)     col0 = W1[:,0], col1 = W1[:,1], col2 = b1 (+ 1.0 carrier at row `mid`)
    # w2_ref : (C_PAD, MID_PAD) [:, 0:mid] = W2, [:, mid] = b2, rest zero
    # out_ref: (C_PAD, P_PAD)   channels-major, NCHW-flattened positions (p = h*k + w)
    p_pad = out_ref.shape[-1]

    # Coordinate grid generated in-kernel: p -> (h, w), h = floor(p/k), w = p - h*k.
    col = jax.lax.broadcasted_iota(jnp.int32, (1, p_pad), 1).astype(jnp.float32)
    h_idx = jnp.floor(col / float(k))          # exact for these magnitudes
    half = float(k // 2)
    x = col - h_idx * float(k) - half          # x_position[p] = (p % k) - k//2
    y = half - h_idx                           # y_position[p] = k//2 - (p // k)

    w1 = w1_ref[...]                           # (MID_PAD, 8)
    w1x = w1[:, 0:1]                           # (MID_PAD, 1)
    w1y = w1[:, 1:2]
    b1 = w1[:, 2:3]

    # Layer 1 on the VPU: rank-1 broadcasts; row `mid` of h becomes the constant-1
    # bias carrier (relu(0*x + 0*y + 1) == 1), padded rows stay exactly 0.
    h = jnp.maximum(w1x * x + w1y * y + b1, 0.0)    # (MID_PAD, P_PAD)

    # Layer 2 on the MXU: (C_PAD, MID_PAD) @ (MID_PAD, P_PAD); b2 folded via carrier row.
    out_ref[...] = jnp.dot(w2_ref[...], h, preferred_element_type=jnp.float32)


def geometry_prior_prepare(channels, w1, b1, w2, b2):
    """One-time packing of the conv params into kernel-ready padded arrays (hoist this)."""
    mid = w1.shape[0]
    mid_pad = _round_up(mid + 1, 128)     # +1 for the layer-2 bias carrier row
    c_pad = _round_up(channels, 8)

    # (mid+1, 3): rows 0..mid-1 = [W1 | b1], row `mid` = [0, 0, 1] (carrier).
    w1_aug = jnp.concatenate(
        [jnp.concatenate([w1.astype(jnp.float32),
                          b1.astype(jnp.float32)[:, None]], axis=1),
         jnp.array([[0.0, 0.0, 1.0]], dtype=jnp.float32)],
        axis=0)
    w1_packed = jnp.pad(w1_aug, ((0, mid_pad - (mid + 1)), (0, 8 - 3)))

    # (channels, mid+1): [W2 | b2]; zero padding is exact.
    w2_aug = jnp.concatenate(
        [w2.astype(jnp.float32), b2.astype(jnp.float32)[:, None]], axis=1)
    w2_packed = jnp.pad(w2_aug, ((0, c_pad - channels), (0, mid_pad - (mid + 1))))

    return w1_packed, w2_packed


@functools.partial(jax.jit, static_argnums=(0, 1))
def geometry_prior_run(k, channels, w1_packed, w2_packed):
    """Runs the Pallas kernel; returns (1, channels, 1, k*k) like the PyTorch module."""
    P = k * k
    p_pad = _round_up(P, 128)
    c_pad = w2_packed.shape[0]

    out_p = pl.pallas_call(
        functools.partial(_geometry_prior_kernel, k=k),
        out_shape=jax.ShapeDtypeStruct((c_pad, p_pad), jnp.float32),
        in_specs=[
            pl.BlockSpec(memory_space=pltpu.VMEM),
            pl.BlockSpec(memory_space=pltpu.VMEM),
        ],
        out_specs=pl.BlockSpec(memory_space=pltpu.VMEM),
    )(w1_packed, w2_packed)

    # Already channels-major == NCHW-flattened; just crop padding and add axes.
    return out_p[:channels, :P].reshape(1, channels, 1, P)


def geometry_prior(k, channels, w1, b1, w2, b2):
    """Convenience wrapper (prepare + run). Prefer hoisting/caching prepare() in real use."""
    w1_packed, w2_packed = geometry_prior_prepare(channels, w1, b1, w2, b2)
    return geometry_prior_run(k, channels, w1_packed, w2_packed)


def _reference(k, channels, w1, b1, w2, b2):
    """Pure-JAX reference mirroring the PyTorch 1x1-conv math."""
    a_range = jnp.arange(-(k // 2), k // 2 + 1)
    x_position = jnp.broadcast_to(a_range[None, :], (k, k))
    b_range = jnp.arange(k // 2, -(k // 2) - 1, -1)
    y_position = jnp.broadcast_to(b_range[:, None], (k, k))
    position = jnp.stack([x_position, y_position], axis=0).astype(jnp.float32)  # (2,k,k)
    xf = position.reshape(2, -1).T                                              # (P, 2)
    h = jnp.maximum(xf @ w1.T + b1[None, :], 0.0)
    o = h @ w2.T + b2[None, :]
    return o.T.reshape(1, channels, 1, k * k)


if __name__ == "__main__":
    # Small, module-consistent shapes: k=7 grid, channels=8, multiplier=0.5 -> mid=4.
    k = 7
    channels = 8
    multiplier = 0.5
    mid = int(multiplier * channels)

    key = jax.random.PRNGKey(0)
    k1, k2, k3, k4 = jax.random.split(key, 4)
    # Deterministic "conv" parameters (Conv2d(2, mid, 1) and Conv2d(mid, channels, 1)).
    w1 = 0.1 * jax.random.normal(k1, (mid, 2), dtype=jnp.float32)
    b1 = 0.1 * jax.random.normal(k2, (mid,), dtype=jnp.float32)
    w2 = 0.1 * jax.random.normal(k3, (channels, mid), dtype=jnp.float32)
    b2 = 0.1 * jax.random.normal(k4, (channels,), dtype=jnp.float32)

    # Hoisted one-time weight packing, then the (jitted) kernel call.
    w1_packed, w2_packed = geometry_prior_prepare(channels, w1, b1, w2, b2)
    out = geometry_prior_run(k, channels, w1_packed, w2_packed)
    out = jax.block_until_ready(out)

    ref = _reference(k, channels, w1, b1, w2, b2)
    assert out.shape == (1, channels, 1, k * k), out.shape
    assert jnp.allclose(out, ref, atol=1e-5, rtol=1e-5), "mismatch vs reference"

    print("KERNEL_OK")
</pallas_src>

<mosaic_0001>
module attributes {stable_mosaic.version = 11 : i64} {
  func.func @_geometry_prior_kernel(%arg0: memref<128x8xf32, #tpu.memory_space<vmem>>, %arg1: memref<8x128xf32, #tpu.memory_space<vmem>>, %arg2: memref<8x128xf32, #tpu.memory_space<vmem>>) attributes {dimension_semantics = [], scalar_prefetch = 0 : i64, scratch_operands = 0 : i64, tpu.core_type = #tpu.core_type<tc>} {
    %0 = tpu.iota {dimensions = array<i32: 1>} : vector<1x128xi32>
    %1 = arith.sitofp %0 : vector<1x128xi32> to vector<1x128xf32>
    %cst = arith.constant 7.000000e+00 : f32
    %2 = vector.broadcast %cst : f32 to vector<1x128xf32>
    %3 = arith.divf %1, %2 : vector<1x128xf32>
    %4 = math.floor %3 : vector<1x128xf32>
    %cst_0 = arith.constant 7.000000e+00 : f32
    %5 = vector.broadcast %cst_0 : f32 to vector<1x128xf32>
    %6 = arith.mulf %4, %5 : vector<1x128xf32>
    %7 = arith.subf %1, %6 : vector<1x128xf32>
    %cst_1 = arith.constant 3.000000e+00 : f32
    %8 = vector.broadcast %cst_1 : f32 to vector<1x128xf32>
    %9 = arith.subf %7, %8 : vector<1x128xf32>
    %cst_2 = arith.constant 3.000000e+00 : f32
    %10 = vector.broadcast %cst_2 : f32 to vector<1x128xf32>
    %11 = arith.subf %10, %4 : vector<1x128xf32>
    %c0 = arith.constant 0 : index
    %c0_3 = arith.constant 0 : index
    %12 = vector.load %arg0[%c0, %c0_3] : memref<128x8xf32, #tpu.memory_space<vmem>>, vector<128x8xf32>
    %13 = vector.extract_strided_slice %12 {offsets = [0, 0], sizes = [128, 1], strides = [1, 1]} : vector<128x8xf32> to vector<128x1xf32>
    %14 = vector.extract_strided_slice %12 {offsets = [0, 1], sizes = [128, 1], strides = [1, 1]} : vector<128x8xf32> to vector<128x1xf32>
    %15 = vector.extract_strided_slice %12 {offsets = [0, 2], sizes = [128, 1], strides = [1, 1]} : vector<128x8xf32> to vector<128x1xf32>
    %16 = vector.broadcast %13 : vector<128x1xf32> to vector<128x128xf32>
    %17 = vector.broadcast %9 : vector<1x128xf32> to vector<128x128xf32>
    %18 = arith.mulf %16, %17 : vector<128x128xf32>
    %19 = vector.broadcast %14 : vector<128x1xf32> to vector<128x128xf32>
    %20 = vector.broadcast %11 : vector<1x128xf32> to vector<128x128xf32>
    %21 = arith.mulf %19, %20 : vector<128x128xf32>
    %22 = arith.addf %18, %21 : vector<128x128xf32>
    %23 = vector.broadcast %15 : vector<128x1xf32> to vector<128x128xf32>
    %24 = arith.addf %22, %23 : vector<128x128xf32>
    %cst_4 = arith.constant 0.000000e+00 : f32
    %25 = vector.broadcast %cst_4 : f32 to vector<128x128xf32>
    %26 = arith.maximumf %24, %25 : vector<128x128xf32>
    %c0_5 = arith.constant 0 : index
    %c0_6 = arith.constant 0 : index
    %27 = vector.load %arg1[%c0_5, %c0_6] : memref<8x128xf32, #tpu.memory_space<vmem>>, vector<8x128xf32>
    %cst_7 = arith.constant dense<0.000000e+00> : vector<8x128xf32>
    %28 = tpu.matmul %27, %26, %cst_7 {dimension_numbers = #tpu.dot_dimension_numbers<[1], [0], [0], [1], [0, 0, 1, 1], [], []>} : vector<8x128xf32>, vector<128x128xf32>, vector<8x128xf32> -> vector<8x128xf32>
    %c0_8 = arith.constant 0 : index
    %c0_9 = arith.constant 0 : index
    %29 = vector.load %arg2[%c0_8, %c0_9] : memref<8x128xf32, #tpu.memory_space<vmem>>, vector<8x128xf32>
    tpu.vector_store %arg2[%c0_8, %c0_9], %28 {strides = array<i32>} : memref<8x128xf32, #tpu.memory_space<vmem>>, vector<8x128xf32>,
    return
  }
}

</mosaic_0001>

<llo_original>
// kernel: geometry_prior_run.1
$region0: #{geometry_prior_run.1}
  #allocation0 [shape = 'u32[]', space=smem, size = 0x4, offset = 0x4, fixed_abs, tag = 'smem constant byte address 0x4 - core index']
  #allocation1 [shape = 'u32[144,128]{1,0:T(1,128)}', space=vmem, size = 0x12000, scoped, tag = 'internal scratch']
  %s0 = inlined_call_operand.vmem [shape: f32[128,8], index: 0, kind: input, shape index: {}]
  %s1 = inlined_call_operand.vmem [shape: f32[8,128], index: 1, kind: input, shape index: {}]
  %s2 = inlined_call_operand.hbm [shape: f32[8,128], index: 2, kind: output, shape index: {}]
  %s3 = sld [smem:[#allocation0]]
  $region18: #{geometry_prior_run.1} parent=0
    _
  %s5 = ssub.s32 1, %s3
  %s6 = scalar_select 0, %s5, %s3
  $region1: #{geometry_prior_run.1} parent=0
    #allocation2 [shape = 'u8[4096]{0}', space=vmem, size = 0x1000, scoped, tag = 'output window, operand 0, single buffered']
    #allocation3 [shape = 's32[1]{0}', space=sflag, size = 0x4, scoped, tag = 'scoped memory for geometry_prior_run.1']
    %7 = vsyncpa [#allocation3], 0
    // Predicated region
    $region2: #{geometry_prior_run.1} parent=1 // pred_check
      _
    $region3: #{geometry_prior_run.1} parent=1 // pred_check_branch
      %9 = sbr.rel (0) target = $region5
    $region4: #{geometry_prior_run.1} parent=1 // pred_region
      _
    $region5: #{geometry_prior_run.1} parent=1 // pred_fallthru
      _
    // Predicated region
    $region6: #{geometry_prior_run.1} parent=1 // pred_check
      _
    $region7: #{geometry_prior_run.1} parent=1 // pred_check_branch
      %11 = sbr.rel (0) target = $region9
    $region8: #{geometry_prior_run.1} parent=1 // pred_region
      _
    $region9: #{geometry_prior_run.1} parent=1 // pred_fallthru
      _
    %v12 = vlaneseq
    %v13 = vand.u32 %v12, 127
    %v14 = vcvt.s32.f32 %v13
    %v15 = vrcp.pop 7.0
    %v16 = vmul.f32 %v14, %v15
    %v17 = vfloor.f32 %v16
    %v18 = vmul.f32 %v17, 7.0
    %v19 = vsub.f32 %v14, %v18
    %v20 = vsub.f32 %v19, 3.0
    %v21 = vsub.f32 3.0, %v17
    %v22 = vld [vmem:[%s0] sm:$0xff]
    %v23 = vld [vmem:[%s0 + $0x8] sm:$0xff]
    %v24 = vld [vmem:[%s0 + $0x10] sm:$0xff]
    %v25 = vld [vmem:[%s0 + $0x18] sm:$0xff]
    %v26 = vld [vmem:[%s0 + $0x20] sm:$0xff]
    %v27 = vld [vmem:[%s0 + $0x28] sm:$0xff]
    %v28 = vld [vmem:[%s0 + $0x30] sm:$0xff]
    %v29 = vld [vmem:[%s0 + $0x38] sm:$0xff]
    %v30 = vld [vmem:[%s0 + $0x40] sm:$0xff]
    %v31 = vld [vmem:[%s0 + $0x48] sm:$0xff]
    %v32 = vld [vmem:[%s0 + $0x50] sm:$0xff]
    %v33 = vld [vmem:[%s0 + $0x58] sm:$0xff]
    %v34 = vld [vmem:[%s0 + $0x60] sm:$0xff]
    %v35 = vld [vmem:[%s0 + $0x68] sm:$0xff]
    %v36 = vld [vmem:[%s0 + $0x70] sm:$0xff]
    %v37 = vld [vmem:[%s0 + $0x78] sm:$0xff]
    %39 = vset.pattern.permute.xlu0 0
    %40 = vperm.xlu0 %39, %v22
    %v41 = vpop.permute.xlu0 %40
    %44 = vset.pattern.permute.xlu0 0
    %45 = vperm.xlu0 %44, %v23
    %v46 = vpop.permute.xlu0 %45
    %49 = vset.pattern.permute.xlu0 0
    %50 = vperm.xlu0 %49, %v24
    %v51 = vpop.permute.xlu0 %50
    %54 = vset.pattern.permute.xlu0 0
    %55 = vperm.xlu0 %54, %v25
    %v56 = vpop.permute.xlu0 %55
    %59 = vset.pattern.permute.xlu0 0
    %60 = vperm.xlu0 %59, %v26
    %v61 = vpop.permute.xlu0 %60
    %64 = vset.pattern.permute.xlu0 0
    %65 = vperm.xlu0 %64, %v27
    %v66 = vpop.permute.xlu0 %65
    %69 = vset.pattern.permute.xlu0 0
    %70 = vperm.xlu0 %69, %v28
    %v71 = vpop.permute.xlu0 %70
    %74 = vset.pattern.permute.xlu0 0
    %75 = vperm.xlu0 %74, %v29
    %v76 = vpop.permute.xlu0 %75
    %79 = vset.pattern.permute.xlu0 0
    %80 = vperm.xlu0 %79, %v30
    %v81 = vpop.permute.xlu0 %80
    %84 = vset.pattern.permute.xlu0 0
    %85 = vperm.xlu0 %84, %v31
    %v86 = vpop.permute.xlu0 %85
    %89 = vset.pattern.permute.xlu0 0
    %90 = vperm.xlu0 %89, %v32
    %v91 = vpop.permute.xlu0 %90
    %94 = vset.pattern.permute.xlu0 0
    %95 = vperm.xlu0 %94, %v33
    %v96 = vpop.permute.xlu0 %95
    %99 = vset.pattern.permute.xlu0 0
    %100 = vperm.xlu0 %99, %v34
    %v101 = vpop.permute.xlu0 %100
    %104 = vset.pattern.permute.xlu0 0
    %105 = vperm.xlu0 %104, %v35
    %v106 = vpop.permute.xlu0 %105
    %109 = vset.pattern.permute.xlu0 0
    %110 = vperm.xlu0 %109, %v36
    %v111 = vpop.permute.xlu0 %110
    %114 = vset.pattern.permute.xlu0 0
    %115 = vperm.xlu0 %114, %v37
    %v116 = vpop.permute.xlu0 %115
    %v118 = vmul.f32 %v41, %v20
    %v119 = vmul.f32 %v46, %v20
    %v120 = vmul.f32 %v51, %v20
    %v121 = vmul.f32 %v56, %v20
    %v122 = vmul.f32 %v61, %v20
    %v123 = vmul.f32 %v66, %v20
    %v124 = vmul.f32 %v71, %v20
    %v125 = vmul.f32 %v76, %v20
    %v126 = vmul.f32 %v81, %v20
    %v127 = vmul.f32 %v86, %v20
    %v128 = vmul.f32 %v91, %v20
    %v129 = vmul.f32 %v96, %v20
    %v130 = vmul.f32 %v101, %v20
    %v131 = vmul.f32 %v106, %v20
    %v132 = vmul.f32 %v111, %v20
    %v133 = vmul.f32 %v116, %v20
    %134 = vset.pattern.permute.xlu0 1
    %135 = vperm.xlu0 %134, %v22
    %v136 = vpop.permute.xlu0 %135
    %138 = vset.pattern.permute.xlu0 1
    %139 = vperm.xlu0 %138, %v23
    %v140 = vpop.permute.xlu0 %139
    %142 = vset.pattern.permute.xlu0 1
    %143 = vperm.xlu0 %142, %v24
    %v144 = vpop.permute.xlu0 %143
    %146 = vset.pattern.permute.xlu0 1
    %147 = vperm.xlu0 %146, %v25
    %v148 = vpop.permute.xlu0 %147
    %150 = vset.pattern.permute.xlu0 1
    %151 = vperm.xlu0 %150, %v26
    %v152 = vpop.permute.xlu0 %151
    %154 = vset.pattern.permute.xlu0 1
    %155 = vperm.xlu0 %154, %v27
    %v156 = vpop.permute.xlu0 %155
    %158 = vset.pattern.permute.xlu0 1
    %159 = vperm.xlu0 %158, %v28
    %v160 = vpop.permute.xlu0 %159
    %162 = vset.pattern.permute.xlu0 1
    %163 = vperm.xlu0 %162, %v29
    %v164 = vpop.permute.xlu0 %163
    %166 = vset.pattern.permute.xlu0 1
    %167 = vperm.xlu0 %166, %v30
    %v168 = vpop.permute.xlu0 %167
    %170 = vset.pattern.permute.xlu0 1
    %171 = vperm.xlu0 %170, %v31
    %v172 = vpop.permute.xlu0 %171
    %174 = vset.pattern.permute.xlu0 1
    %175 = vperm.xlu0 %174, %v32
    %v176 = vpop.permute.xlu0 %175
    %178 = vset.pattern.permute.xlu0 1
    %179 = vperm.xlu0 %178, %v33
    %v180 = vpop.permute.xlu0 %179
    %182 = vset.pattern.permute.xlu0 1
    %183 = vperm.xlu0 %182, %v34
    %v184 = vpop.permute.xlu0 %183
    %186 = vset.pattern.permute.xlu0 1
    %187 = vperm.xlu0 %186, %v35
    %v188 = vpop.permute.xlu0 %187
    %190 = vset.pattern.permute.xlu0 1
    %191 = vperm.xlu0 %190, %v36
    %v192 = vpop.permute.xlu0 %191
    %194 = vset.pattern.permute.xlu0 1
    %195 = vperm.xlu0 %194, %v37
    %v196 = vpop.permute.xlu0 %195
    %v198 = vmul.f32 %v136, %v21
    %v199 = vmul.f32 %v140, %v21
    %v200 = vmul.f32 %v144, %v21
    %v201 = vmul.f32 %v148, %v21
    %v202 = vmul.f32 %v152, %v21
    %v203 = vmul.f32 %v156, %v21
    %v204 = vmul.f32 %v160, %v21
    %v205 = vmul.f32 %v164, %v21
    %v206 = vmul.f32 %v168, %v21
    %v207 = vmul.f32 %v172, %v21
    %v208 = vmul.f32 %v176, %v21
    %v209 = vmul.f32 %v180, %v21
    %v210 = vmul.f32 %v184, %v21
    %v211 = vmul.f32 %v188, %v21
    %v212 = vmul.f32 %v192, %v21
    %v213 = vmul.f32 %v196, %v21
    %v214 = vadd.f32 %v118, %v198
    %v215 = vadd.f32 %v119, %v199
    %v216 = vadd.f32 %v120, %v200
    %v217 = vadd.f32 %v121, %v201
    %v218 = vadd.f32 %v122, %v202
    %v219 = vadd.f32 %v123, %v203
    %v220 = vadd.f32 %v124, %v204
    %v221 = vadd.f32 %v125, %v205
    %v222 = vadd.f32 %v126, %v206
    %v223 = vadd.f32 %v127, %v207
    %v224 = vadd.f32 %v128, %v208
    %v225 = vadd.f32 %v129, %v209
    %v226 = vadd.f32 %v130, %v210
    %v227 = vadd.f32 %v131, %v211
    %v228 = vadd.f32 %v132, %v212
    %v229 = vadd.f32 %v133, %v213
    %230 = vset.pattern.permute.xlu0 2
    %231 = vperm.xlu0 %230, %v22
    %v232 = vpop.permute.xlu0 %231
    %234 = vset.pattern.permute.xlu0 2
    %235 = vperm.xlu0 %234, %v23
    %v236 = vpop.permute.xlu0 %235
    %238 = vset.pattern.permute.xlu0 2
    %239 = vperm.xlu0 %238, %v24
    %v240 = vpop.permute.xlu0 %239
    %242 = vset.pattern.permute.xlu0 2
    %243 = vperm.xlu0 %242, %v25
    %v244 = vpop.permute.xlu0 %243
    %246 = vset.pattern.permute.xlu0 2
    %247 = vperm.xlu0 %246, %v26
    %v248 = vpop.permute.xlu0 %247
    %250 = vset.pattern.permute.xlu0 2
    %251 = vperm.xlu0 %250, %v27
    %v252 = vpop.permute.xlu0 %251
    %254 = vset.pattern.permute.xlu0 2
    %255 = vperm.xlu0 %254, %v28
    %v256 = vpop.permute.xlu0 %255
    %258 = vset.pattern.permute.xlu0 2
    %259 = vperm.xlu0 %258, %v29
    %v260 = vpop.permute.xlu0 %259
    %262 = vset.pattern.permute.xlu0 2
    %263 = vperm.xlu0 %262, %v30
    %v264 = vpop.permute.xlu0 %263
    %266 = vset.pattern.permute.xlu0 2
    %267 = vperm.xlu0 %266, %v31
    %v268 = vpop.permute.xlu0 %267
    %270 = vset.pattern.permute.xlu0 2
    %271 = vperm.xlu0 %270, %v32
    %v272 = vpop.permute.xlu0 %271
    %274 = vset.pattern.permute.xlu0 2
    %275 = vperm.xlu0 %274, %v33
    %v276 = vpop.permute.xlu0 %275
    %278 = vset.pattern.permute.xlu0 2
    %279 = vperm.xlu0 %278, %v34
    %v280 = vpop.permute.xlu0 %279
    %282 = vset.pattern.permute.xlu0 2
    %283 = vperm.xlu0 %282, %v35
    %v284 = vpop.permute.xlu0 %283
    %286 = vset.pattern.permute.xlu0 2
    %287 = vperm.xlu0 %286, %v36
    %v288 = vpop.permute.xlu0 %287
    %290 = vset.pattern.permute.xlu0 2
    %291 = vperm.xlu0 %290, %v37
    %v292 = vpop.permute.xlu0 %291
    %v294 = vadd.f32 %v214, %v232
    %v295 = vadd.f32 %v215, %v236
    %v296 = vadd.f32 %v216, %v240
    %v297 = vadd.f32 %v217, %v244
    %v298 = vadd.f32 %v218, %v248
    %v299 = vadd.f32 %v219, %v252
    %v300 = vadd.f32 %v220, %v256
    %v301 = vadd.f32 %v221, %v260
    %v302 = vadd.f32 %v222, %v264
    %v303 = vadd.f32 %v223, %v268
    %v304 = vadd.f32 %v224, %v272
    %v305 = vadd.f32 %v225, %v276
    %v306 = vadd.f32 %v226, %v280
    %v307 = vadd.f32 %v227, %v284
    %v308 = vadd.f32 %v228, %v288
    %v309 = vadd.f32 %v229, %v292
    %v310 = vmax.f32 %v294, 0.0
    %v311 = vmax.f32 %v295, 0.0
    %v312 = vmax.f32 %v296, 0.0
    %v313 = vmax.f32 %v297, 0.0
    %v314 = vmax.f32 %v298, 0.0
    %v315 = vmax.f32 %v299, 0.0
    %v316 = vmax.f32 %v300, 0.0
    %v317 = vmax.f32 %v301, 0.0
    %v318 = vmax.f32 %v302, 0.0
    %v319 = vmax.f32 %v303, 0.0
    %v320 = vmax.f32 %v304, 0.0
    %v321 = vmax.f32 %v305, 0.0
    %v322 = vmax.f32 %v306, 0.0
    %v323 = vmax.f32 %v307, 0.0
    %v324 = vmax.f32 %v308, 0.0
    %v325 = vmax.f32 %v309, 0.0
    %v326 = vld [vmem:[%s1] sm:$0xff]
    %327 = vmatprep.subr.mxu0 0.0
    %328 = vmatpush1.msra.mxu0 %v310
    %329 = vmatprep.subr.mxu0 0.0
    %330 = vmatpush1.msra.mxu0 %v311
    %331 = vmatprep.subr.mxu0 0.0
    %332 = vmatpush1.msra.mxu0 %v312
    %333 = vmatprep.subr.mxu0 0.0
    %334 = vmatpush1.msra.mxu0 %v313
    %335 = vmatprep.subr.mxu0 0.0
    %336 = vmatpush1.msra.mxu0 %v314
    %337 = vmatprep.subr.mxu0 0.0
    %338 = vmatpush1.msra.mxu0 %v315
    %339 = vmatprep.subr.mxu0 0.0
    %340 = vmatpush1.msra.mxu0 %v316
    %341 = vmatprep.subr.mxu0 0.0
    %342 = vmatpush1.msra.mxu0 %v317
    %343 = vmatprep.subr.mxu0 0.0
    %344 = vmatpush1.msra.mxu0 %v318
    %345 = vmatprep.subr.mxu0 0.0
    %346 = vmatpush1.msra.mxu0 %v319
    %347 = vmatprep.subr.mxu0 0.0
    %348 = vmatpush1.msra.mxu0 %v320
    %349 = vmatprep.subr.mxu0 0.0
    %350 = vmatpush1.msra.mxu0 %v321
    %351 = vmatprep.subr.mxu0 0.0
    %352 = vmatpush1.msra.mxu0 %v322
    %353 = vmatprep.subr.mxu0 0.0
    %354 = vmatpush1.msra.mxu0 %v323
    %355 = vmatprep.subr.mxu0 0.0
    %356 = vmatpush1.msra.mxu0 %v324
    %357 = vmatprep.subr.mxu0 0.0
    %358 = vmatpush1.msra.mxu0 %v325
    %359 = vmatprep.subr.mxu0 0.0
    %360 = vmatpush1.msra.mxu0 0.0
    %361 = vmatprep.subr.mxu0 0.0
    %362 = vmatpush1.msra.mxu0 0.0
    %363 = vmatprep.subr.mxu0 0.0
    %364 = vmatpush1.msra.mxu0 0.0
    %365 = vmatprep.subr.mxu0 0.0
    %366 = vmatpush1.msra.mxu0 0.0
    %367 = vmatprep.subr.mxu0 0.0
    %368 = vmatpush1.msra.mxu0 0.0
    %369 = vmatprep.subr.mxu0 0.0
    %370 = vmatpush1.msra.mxu0 0.0
    %371 = vmatprep.subr.mxu0 0.0
    %372 = vmatpush1.msra.mxu0 0.0
    %373 = vmatprep.subr.mxu0 0.0
    %374 = vmatpush1.msra.mxu0 0.0
    %375 = vmatprep.subr.mxu0 0.0
    %376 = vmatpush1.msra.mxu0 0.0
    %377 = vmatprep.subr.mxu0 0.0
    %378 = vmatpush1.msra.mxu0 0.0
    %379 = vmatprep.subr.mxu0 0.0
    %380 = vmatpush1.msra.mxu0 0.0
    %381 = vmatprep.subr.mxu0 0.0
    %382 = vmatpush1.msra.mxu0 0.0
    %383 = vmatprep.subr.mxu0 0.0
    %384 = vmatpush1.msra.mxu0 0.0
    %385 = vmatprep.subr.mxu0 0.0
    %386 = vmatpush1.msra.mxu0 0.0
    %387 = vmatprep.subr.mxu0 0.0
    %388 = vmatpush1.msra.mxu0 0.0
    %389 = vmatprep.subr.mxu0 0.0
    %390 = vmatpush1.msra.mxu0 0.0
    %391 = vmatprep.mubr.f32.mxu0 0.0
    %392 = vmatmul.mubr.f32.gmra.mrb[0].mxu0 %v326
    %v393 = vpop.f32.mrb[0].mxu0
    %v394 = vadd.f32 0.0, %v393
    %v395 = vpop.f32.mrb[0].mxu0
    %396 = vdwg.mxu0
    %397 = vst [vmem:[#allocation2] sm:$0xff] %v394
    // Predicated region
    $region10: #{geometry_prior_run.1} parent=1 // pred_check
      _
    $region11: #{geometry_prior_run.1} parent=1 // pred_check_branch
      %399 = sbr.rel (0) target = $region13
    $region12: #{geometry_prior_run.1} parent=1 // pred_region
      %s401 = ssub.s32 128, 128
      %402 = vsyncadd [#allocation3], %s401
      %s404 = sshll.u32 [#allocation2], 4
      %s405 = int_to_ptr.vmem [resolvable:$true] %s404
      %407 = dma.vmem_to_hbm [thread:$0]  %s405, 128, %s2, [#allocation3]
    $region13: #{geometry_prior_run.1} parent=1 // pred_fallthru
      _
    // Predicated region
    $region14: #{geometry_prior_run.1} parent=1 // pred_check
      _
    $region15: #{geometry_prior_run.1} parent=1 // pred_check_branch
      %409 = sbr.rel (0) target = $region17
    $region16: #{geometry_prior_run.1} parent=1 // pred_region
      %410 = dma.done [#allocation3], 128
    $region17: #{geometry_prior_run.1} parent=1 // pred_fallthru
      _
    %411 = vsyncpa [#allocation3], 1

</llo_original>
